<compile_context>
chip_gen: v7x
topology: tpu7x:2x2x1
jax: 0.10.0
libtpu: 0.0.40
codegen_flags: <defaults>
</compile_context>

<pallas_src>
import jax
import jax.numpy as jnp
from jax.experimental import pallas as pl
from jax.experimental.pallas import tpu as pltpu

# Constants that corebehrt imports from its constants module (synthetic values).
TIME2VEC_AGE_MULTIPLIER = 1e-2
TIME2VEC_ABSPOS_MULTIPLIER = 1e-4
TIME2VEC_MIN_CLIP = -100.0
TIME2VEC_MAX_CLIP = 100.0
LAYER_NORM_EPS = 1e-5  # nn.LayerNorm default


def ehr_embeddings_kernel(ids_smem,                      # (N_pad,) int32, SMEM (scalar prefetch)
                          seg_ref, age_ref, abspos_ref,  # (TT, 1) VMEM tiles
                          concept_hbm,                   # (V, H) HBM ref (pl.ANY)
                          segment_tbl_ref,               # (T, H) VMEM, grid-resident
                          age_w_ref, age_phi_ref,
                          abs_w_ref, abs_phi_ref,        # (1, H) VMEM, grid-resident
                          gamma_ref, beta_ref,           # (1, H) VMEM, grid-resident
                          out_ref,                       # (TT, H)
                          gather_buf, copy_sem):         # scratch: VMEM (TT,H), DMA sem (1,)
    TT, H = out_ref.shape
    T = segment_tbl_ref.shape[0]
    base = pl.program_id(0) * TT

    # ---- issue the DMA row-gather from the HBM concept table ----
    @pl.loop(0, TT)
    def _issue(t):
        row = ids_smem[base + t]
        pltpu.make_async_copy(concept_hbm.at[pl.ds(row, 1), :],
                              gather_buf.at[pl.ds(t, 1), :],
                              copy_sem.at[0]).start()

    # ---- segment embedding: T is tiny -> VPU selects, no MXU ----
    seg = seg_ref[...]                                    # (TT, 1) int32
    acc = jnp.zeros((TT, H), jnp.float32)
    for t in range(T):                                    # T ~ 4, static unroll
        mask = (seg == t).astype(jnp.float32)             # (TT, 1)
        acc = acc + mask * segment_tbl_ref[pl.ds(t, 1), :]  # bcast (1, H) row

    # ---- Time2Vec: col 0 = clamped linear term, cols 1..H-1 = cos(periodic) ----
    col_is_linear = jax.lax.broadcasted_iota(jnp.int32, (1, H), 1) == 0

    def time2vec(tau, scale, w, phi):
        tau = tau * scale                                 # (TT, 1)
        lin = tau * w + phi                               # (TT, H)
        lin_clipped = jnp.clip(lin, TIME2VEC_MIN_CLIP, TIME2VEC_MAX_CLIP)
        periodic = jnp.cos(lin)                           # EUP slot
        return jnp.where(col_is_linear, lin_clipped, periodic)

    acc = acc + time2vec(age_ref[...], TIME2VEC_AGE_MULTIPLIER,
                         age_w_ref[...], age_phi_ref[...])
    acc = acc + time2vec(abspos_ref[...], TIME2VEC_ABSPOS_MULTIPLIER,
                         abs_w_ref[...], abs_phi_ref[...])

    # ---- wait for all gather DMAs (one byte-count-matched wait per row) ----
    @pl.loop(0, TT)
    def _wait(t):
        pltpu.make_async_copy(concept_hbm.at[pl.ds(0, 1), :],
                              gather_buf.at[pl.ds(0, 1), :],
                              copy_sem.at[0]).wait()

    x = acc + gather_buf[...]

    # ---- LayerNorm over hidden dim (kept in f32) ----
    mean = jnp.mean(x, axis=-1, keepdims=True)
    var = jnp.mean((x - mean) ** 2, axis=-1, keepdims=True)
    x_hat = (x - mean) * jax.lax.rsqrt(var + LAYER_NORM_EPS)
    out = x_hat * gamma_ref[...] + beta_ref[...]

    # TODO(synk): nn.Dropout is identity in eval/inference; training-mode
    # stochastic dropout (pltpu.prng_seed + prng_random_bits) not implemented.
    out_ref[...] = out.astype(out_ref.dtype)


def ehr_embeddings(input_ids, segments, age, abspos, params, *, token_tile=128):
    B, S = input_ids.shape
    V, H = params["concept_tbl"].shape
    T = params["segment_tbl"].shape[0]

    N = B * S
    TT = int(token_tile)
    if N < TT:
        TT = max(8, ((N + 7) // 8) * 8)   # second-to-last block dim: multiple of 8
    num_tiles = -(-N // TT)
    N_pad = num_tiles * TT
    pad = N_pad - N

    # Flatten tokens; pad rows map to concept row 0 and are sliced off below.
    ids_flat = jnp.pad(input_ids.reshape(N).astype(jnp.int32), (0, pad))
    segs_2d = jnp.pad(segments.reshape(N).astype(jnp.int32), (0, pad))[:, None]
    age_2d = jnp.pad(age.reshape(N).astype(jnp.float32), (0, pad))[:, None]
    abspos_2d = jnp.pad(abspos.reshape(N).astype(jnp.float32), (0, pad))[:, None]

    tok_map = lambda i, ids: (i, 0)   # per-token-tile blocks
    rep_map = lambda i, ids: (0, 0)   # small grid-resident parameters

    # Advisory cost hint: this op is HBM-bandwidth bound, not FLOP bound.
    flops = 20 * N_pad * H
    transcendentals = 2 * N_pad * H
    bytes_accessed = 2 * N_pad * H * 4 + 4 * N_pad * 4 + (T + 6) * H * 4

    out = pl.pallas_call(
        ehr_embeddings_kernel,
        out_shape=jax.ShapeDtypeStruct((N_pad, H), jnp.float32),
        grid_spec=pltpu.PrefetchScalarGridSpec(
            num_scalar_prefetch=1,                 # input_ids -> SMEM
            grid=(num_tiles,),
            in_specs=[
                pl.BlockSpec((TT, 1), tok_map),    # segments
                pl.BlockSpec((TT, 1), tok_map),    # age
                pl.BlockSpec((TT, 1), tok_map),    # abspos
                pl.BlockSpec(memory_space=pl.ANY),  # concept table stays in HBM
                pl.BlockSpec((T, H), rep_map),     # segment table (tiny, VMEM)
                pl.BlockSpec((1, H), rep_map),     # age w
                pl.BlockSpec((1, H), rep_map),     # age phi
                pl.BlockSpec((1, H), rep_map),     # abspos w
                pl.BlockSpec((1, H), rep_map),     # abspos phi
                pl.BlockSpec((1, H), rep_map),     # LN gamma
                pl.BlockSpec((1, H), rep_map),     # LN beta
            ],
            out_specs=pl.BlockSpec((TT, H), tok_map),
            scratch_shapes=[pltpu.VMEM((TT, H), jnp.float32),   # gather buffer
                            pltpu.SemaphoreType.DMA((1,))],
        ),
        compiler_params=pltpu.CompilerParams(
            dimension_semantics=("parallel",),     # megacore / 2-TC sharding
            vmem_limit_bytes=int(min(48 * 2**20,
                                     max(16 * 2**20, 16 * TT * H * 4 + 4 * 2**20))),
        ),
        cost_estimate=pl.CostEstimate(flops=flops,
                                      transcendentals=transcendentals,
                                      bytes_accessed=bytes_accessed),
    )(ids_flat, segs_2d, age_2d, abspos_2d,
      params["concept_tbl"], params["segment_tbl"],
      params["age_w"], params["age_phi"],
      params["abs_w"], params["abs_phi"],
      params["gamma"], params["beta"])

    return out[:N].reshape(B, S, H)


def reference_jax(input_ids, segments, age, abspos, params):
    """Pure-JAX reference mirroring the PyTorch forward."""
    concept = params["concept_tbl"][input_ids]
    segment = params["segment_tbl"][segments]

    def t2v(tau, scale, w, phi):
        tau = (tau * scale)[:, :, None]
        lin = tau * w[None, :, :] + phi[None, :, :]
        lin1 = jnp.clip(lin[..., :1], TIME2VEC_MIN_CLIP, TIME2VEC_MAX_CLIP)
        per = jnp.cos(lin[..., 1:])
        return jnp.concatenate([lin1, per], axis=-1)

    x = (concept + segment
         + t2v(age, TIME2VEC_AGE_MULTIPLIER, params["age_w"], params["age_phi"])
         + t2v(abspos, TIME2VEC_ABSPOS_MULTIPLIER, params["abs_w"], params["abs_phi"]))
    mean = jnp.mean(x, axis=-1, keepdims=True)
    var = jnp.mean((x - mean) ** 2, axis=-1, keepdims=True)
    x_hat = (x - mean) / jnp.sqrt(var + LAYER_NORM_EPS)
    return x_hat * params["gamma"][None, :, :] + params["beta"][None, :, :]


if __name__ == "__main__":
    B, S, H = 2, 8, 32
    VOCAB, TYPE_VOCAB = 128, 4
    PAD_TOKEN_ID = 0

    key = jax.random.PRNGKey(0)
    keys = jax.random.split(key, 12)

    # ---- deterministic parameter init (shapes from the module __init__) ----
    concept_tbl = jax.random.normal(keys[0], (VOCAB, H), jnp.float32)
    concept_tbl = concept_tbl.at[PAD_TOKEN_ID].set(0.0)  # padding_idx=0 row zeroed
    segment_tbl = jax.random.normal(keys[1], (TYPE_VOCAB, H), jnp.float32)

    def t2v_params(k):
        k0, k1, k2, k3 = jax.random.split(k, 4)
        w0 = jax.random.normal(k0, (1, 1), jnp.float32)
        phi0 = jax.random.normal(k1, (1,), jnp.float32)
        w = jax.random.normal(k2, (1, H - 1), jnp.float32)
        phi = jax.random.normal(k3, (H - 1,), jnp.float32)
        # pack: column 0 = (w0, phi0), columns 1..H-1 = (w, phi)
        w_pack = jnp.concatenate([w0, w], axis=1)                    # (1, H)
        phi_pack = jnp.concatenate([phi0, phi], axis=0)[None, :]     # (1, H)
        return w_pack, phi_pack

    age_w, age_phi = t2v_params(keys[2])
    abs_w, abs_phi = t2v_params(keys[3])

    params = dict(
        concept_tbl=concept_tbl, segment_tbl=segment_tbl,
        age_w=age_w, age_phi=age_phi,
        abs_w=abs_w, abs_phi=abs_phi,
        gamma=jnp.ones((1, H), jnp.float32),   # LayerNorm weight init
        beta=jnp.zeros((1, H), jnp.float32),   # LayerNorm bias init
    )

    # ---- deterministic example inputs ----
    input_ids = jax.random.randint(keys[4], (B, S), 0, VOCAB, dtype=jnp.int32)
    input_ids = input_ids.at[:, -1].set(PAD_TOKEN_ID)  # exercise padding row
    segments = jax.random.randint(keys[5], (B, S), 0, TYPE_VOCAB, dtype=jnp.int32)
    age = jax.random.uniform(keys[6], (B, S), jnp.float32, 0.0, 100.0)
    abspos = jax.random.uniform(keys[7], (B, S), jnp.float32, 0.0, 10000.0)

    out = jax.block_until_ready(
        jax.jit(ehr_embeddings)(input_ids, segments, age, abspos, params))
    ref = reference_jax(input_ids, segments, age, abspos, params)

    assert out.shape == (B, S, H) and out.dtype == jnp.float32
    assert jnp.allclose(out, ref, atol=1e-4, rtol=1e-4), "mismatch vs reference"
    print("KERNEL_OK")
</pallas_src>

<mosaic_0001>
module attributes {stable_mosaic.version = 11 : i64} {
  func.func @ehr_embeddings_kernel(%arg0: i32, %arg1: memref<16xi32, #tpu.memory_space<smem>>, %arg2: memref<16x1xi32, #tpu.memory_space<vmem>>, %arg3: memref<16x1xf32, #tpu.memory_space<vmem>>, %arg4: memref<16x1xf32, #tpu.memory_space<vmem>>, %arg5: memref<128x32xf32, #tpu.memory_space<any>>, %arg6: memref<4x32xf32, #tpu.memory_space<vmem>>, %arg7: memref<1x32xf32, #tpu.memory_space<vmem>>, %arg8: memref<1x32xf32, #tpu.memory_space<vmem>>, %arg9: memref<1x32xf32, #tpu.memory_space<vmem>>, %arg10: memref<1x32xf32, #tpu.memory_space<vmem>>, %arg11: memref<1x32xf32, #tpu.memory_space<vmem>>, %arg12: memref<1x32xf32, #tpu.memory_space<vmem>>, %arg13: memref<16x32xf32, #tpu.memory_space<vmem>>, %arg14: memref<16x32xf32, #tpu.memory_space<vmem>>, %arg15: memref<1x!tpu.dma_semaphore, #tpu.memory_space<semaphore_mem>>) attributes {dimension_semantics = [#tpu.dimension_semantics<parallel>], iteration_bounds = array<i64: 1>, scalar_prefetch = 1 : i64, scratch_operands = 2 : i64, tpu.core_type = #tpu.core_type<tc>, window_params = [{transform_indices = @transform_0, window_bounds = array<i64: 16, 1>}, {transform_indices = @transform_1, window_bounds = array<i64: 16, 1>}, {transform_indices = @transform_2, window_bounds = array<i64: 16, 1>}, {}, {pipeline_mode = #tpu.pipeline_mode<synchronous>, transform_indices = @transform_4, window_bounds = array<i64: 4, 32>}, {pipeline_mode = #tpu.pipeline_mode<synchronous>, transform_indices = @transform_5, window_bounds = array<i64: 1, 32>}, {pipeline_mode = #tpu.pipeline_mode<synchronous>, transform_indices = @transform_6, window_bounds = array<i64: 1, 32>}, {pipeline_mode = #tpu.pipeline_mode<synchronous>, transform_indices = @transform_7, window_bounds = array<i64: 1, 32>}, {pipeline_mode = #tpu.pipeline_mode<synchronous>, transform_indices = @transform_8, window_bounds = array<i64: 1, 32>}, {pipeline_mode = #tpu.pipeline_mode<synchronous>, transform_indices = @transform_9, window_bounds = array<i64: 1, 32>}, {pipeline_mode = #tpu.pipeline_mode<synchronous>, transform_indices = @transform_10, window_bounds = array<i64: 1, 32>}, {transform_indices = @transform_11, window_bounds = array<i64: 16, 32>}]} {
    %c16_i32 = arith.constant 16 : i32
    %0 = arith.muli %arg0, %c16_i32 : i32
    %c0_i32 = arith.constant 0 : i32
    %c16_i32_0 = arith.constant 16 : i32
    %1 = arith.addi %c0_i32, %c16_i32_0 : i32
    %c1_i32 = arith.constant 1 : i32
    scf.for %arg16 = %c0_i32 to %1 step %c1_i32  : i32 {
      %c1_i32_45 = arith.constant 1 : i32
      %109 = arith.muli %arg16, %c1_i32_45 : i32
      %c0_i32_46 = arith.constant 0 : i32
      %110 = arith.addi %c0_i32_46, %109 : i32
      %111 = arith.addi %0, %110 : i32
      %112 = arith.index_cast %111 : i32 to index
      %113 = memref.load %arg1[%112] : memref<16xi32, #tpu.memory_space<smem>>
      %c0_i32_47 = arith.constant 0 : i32
      %c0_i32_48 = arith.constant 0 : i32
      %114 = tpu.memref_slice %arg5[%113, %c0_i32_48] : memref<128x32xf32, #tpu.memory_space<any>> -> memref<1x32xf32, #tpu.memory_space<any>>
      %c0_i32_49 = arith.constant 0 : i32
      %115 = tpu.memref_slice %arg14[%110, %c0_i32_49] : memref<16x32xf32, #tpu.memory_space<vmem>> -> memref<1x32xf32, #tpu.memory_space<vmem>>
      %116 = tpu.memref_slice %arg15[%c0_i32_47] : memref<1x!tpu.dma_semaphore, #tpu.memory_space<semaphore_mem>> -> memref<1x!tpu.dma_semaphore, #tpu.memory_space<semaphore_mem>>
      %117 = tpu.memref_squeeze %116 : memref<1x!tpu.dma_semaphore, #tpu.memory_space<semaphore_mem>> -> memref<!tpu.dma_semaphore, #tpu.memory_space<semaphore_mem>>
      tpu.enqueue_dma source(%114 : memref<1x32xf32, #tpu.memory_space<any>>) target(%115 : memref<1x32xf32, #tpu.memory_space<vmem>>) target_semaphore(%117 : memref<!tpu.dma_semaphore, #tpu.memory_space<semaphore_mem>>)
    }
    %c16_i32_1 = arith.constant 16 : i32
    %c0 = arith.constant 0 : index
    %c0_2 = arith.constant 0 : index
    %2 = vector.load %arg2[%c0, %c0_2] : memref<16x1xi32, #tpu.memory_space<vmem>>, vector<16x1xi32>
    %cst = arith.constant 0.000000e+00 : f32
    %3 = vector.broadcast %cst : f32 to vector<16x32xf32>
    %c0_i32_3 = arith.constant 0 : i32
    %4 = vector.broadcast %c0_i32_3 : i32 to vector<16x1xi32>
    %5 = arith.cmpi eq, %2, %4 : vector<16x1xi32>
    %6 = arith.extui %5 : vector<16x1xi1> to vector<16x1xi32>
    %7 = arith.sitofp %6 : vector<16x1xi32> to vector<16x1xf32>
    %c0_4 = arith.constant 0 : index
    %c0_5 = arith.constant 0 : index
    %8 = vector.load %arg6[%c0_4, %c0_5] : memref<4x32xf32, #tpu.memory_space<vmem>>, vector<1x32xf32>
    %9 = vector.broadcast %7 : vector<16x1xf32> to vector<16x32xf32>
    %10 = vector.broadcast %8 : vector<1x32xf32> to vector<16x32xf32>
    %11 = arith.mulf %9, %10 : vector<16x32xf32>
    %12 = arith.addf %3, %11 : vector<16x32xf32>
    %c1_i32_6 = arith.constant 1 : i32
    %13 = vector.broadcast %c1_i32_6 : i32 to vector<16x1xi32>
    %14 = arith.cmpi eq, %2, %13 : vector<16x1xi32>
    %15 = arith.extui %14 : vector<16x1xi1> to vector<16x1xi32>
    %16 = arith.sitofp %15 : vector<16x1xi32> to vector<16x1xf32>
    %c1 = arith.constant 1 : index
    %c0_7 = arith.constant 0 : index
    %17 = vector.load %arg6[%c1, %c0_7] : memref<4x32xf32, #tpu.memory_space<vmem>>, vector<1x32xf32>
    %18 = vector.broadcast %16 : vector<16x1xf32> to vector<16x32xf32>
    %19 = vector.broadcast %17 : vector<1x32xf32> to vector<16x32xf32>
    %20 = arith.mulf %18, %19 : vector<16x32xf32>
    %21 = arith.addf %12, %20 : vector<16x32xf32>
    %c2_i32 = arith.constant 2 : i32
    %22 = vector.broadcast %c2_i32 : i32 to vector<16x1xi32>
    %23 = arith.cmpi eq, %2, %22 : vector<16x1xi32>
    %24 = arith.extui %23 : vector<16x1xi1> to vector<16x1xi32>
    %25 = arith.sitofp %24 : vector<16x1xi32> to vector<16x1xf32>
    %c2 = arith.constant 2 : index
    %c0_8 = arith.constant 0 : index
    %26 = vector.load %arg6[%c2, %c0_8] : memref<4x32xf32, #tpu.memory_space<vmem>>, vector<1x32xf32>
    %27 = vector.broadcast %25 : vector<16x1xf32> to vector<16x32xf32>
    %28 = vector.broadcast %26 : vector<1x32xf32> to vector<16x32xf32>
    %29 = arith.mulf %27, %28 : vector<16x32xf32>
    %30 = arith.addf %21, %29 : vector<16x32xf32>
    %c3_i32 = arith.constant 3 : i32
    %31 = vector.broadcast %c3_i32 : i32 to vector<16x1xi32>
    %32 = arith.cmpi eq, %2, %31 : vector<16x1xi32>
    %33 = arith.extui %32 : vector<16x1xi1> to vector<16x1xi32>
    %34 = arith.sitofp %33 : vector<16x1xi32> to vector<16x1xf32>
    %c3 = arith.constant 3 : index
    %c0_9 = arith.constant 0 : index
    %35 = vector.load %arg6[%c3, %c0_9] : memref<4x32xf32, #tpu.memory_space<vmem>>, vector<1x32xf32>
    %36 = vector.broadcast %34 : vector<16x1xf32> to vector<16x32xf32>
    %37 = vector.broadcast %35 : vector<1x32xf32> to vector<16x32xf32>
    %38 = arith.mulf %36, %37 : vector<16x32xf32>
    %39 = arith.addf %30, %38 : vector<16x32xf32>
    %40 = tpu.iota {dimensions = array<i32: 1>} : vector<1x32xi32>
    %c0_i32_10 = arith.constant 0 : i32
    %41 = vector.broadcast %c0_i32_10 : i32 to vector<1x32xi32>
    %42 = arith.cmpi eq, %40, %41 : vector<1x32xi32>
    %c0_11 = arith.constant 0 : index
    %c0_12 = arith.constant 0 : index
    %43 = vector.load %arg3[%c0_11, %c0_12] : memref<16x1xf32, #tpu.memory_space<vmem>>, vector<16x1xf32>
    %c0_13 = arith.constant 0 : index
    %c0_14 = arith.constant 0 : index
    %44 = vector.load %arg7[%c0_13, %c0_14] : memref<1x32xf32, #tpu.memory_space<vmem>>, vector<1x32xf32>
    %c0_15 = arith.constant 0 : index
    %c0_16 = arith.constant 0 : index
    %45 = vector.load %arg8[%c0_15, %c0_16] : memref<1x32xf32, #tpu.memory_space<vmem>>, vector<1x32xf32>
    %cst_17 = arith.constant 0.00999999977 : f32
    %46 = vector.broadcast %cst_17 : f32 to vector<16x1xf32>
    %47 = arith.mulf %43, %46 : vector<16x1xf32>
    %48 = vector.broadcast %47 : vector<16x1xf32> to vector<16x32xf32>
    %49 = vector.broadcast %44 : vector<1x32xf32> to vector<16x32xf32>
    %50 = arith.mulf %48, %49 : vector<16x32xf32>
    %51 = vector.broadcast %45 : vector<1x32xf32> to vector<16x32xf32>
    %52 = arith.addf %50, %51 : vector<16x32xf32>
    %cst_18 = arith.constant -1.000000e+02 : f32
    %cst_19 = arith.constant 1.000000e+02 : f32
    %53 = vector.broadcast %cst_18 : f32 to vector<16x32xf32>
    %54 = arith.maximumf %53, %52 : vector<16x32xf32>
    %55 = vector.broadcast %cst_19 : f32 to vector<16x32xf32>
    %56 = arith.minimumf %55, %54 : vector<16x32xf32>
    %57 = math.cos %52 : vector<16x32xf32>
    %58 = vector.shape_cast %42 : vector<1x32xi1> to vector<1x32xi1>
    %59 = vector.broadcast %58 : vector<1x32xi1> to vector<16x32xi1>
    %60 = arith.select %59, %56, %57 : vector<16x32xi1>, vector<16x32xf32>
    %61 = arith.addf %39, %60 : vector<16x32xf32>
    %c0_20 = arith.constant 0 : index
    %c0_21 = arith.constant 0 : index
    %62 = vector.load %arg4[%c0_20, %c0_21] : memref<16x1xf32, #tpu.memory_space<vmem>>, vector<16x1xf32>
    %c0_22 = arith.constant 0 : index
    %c0_23 = arith.constant 0 : index
    %63 = vector.load %arg9[%c0_22, %c0_23] : memref<1x32xf32, #tpu.memory_space<vmem>>, vector<1x32xf32>
    %c0_24 = arith.constant 0 : index
    %c0_25 = arith.constant 0 : index
    %64 = vector.load %arg10[%c0_24, %c0_25] : memref<1x32xf32, #tpu.memory_space<vmem>>, vector<1x32xf32>
    %cst_26 = arith.constant 9.99999974E-5 : f32
    %65 = vector.broadcast %cst_26 : f32 to vector<16x1xf32>
    %66 = arith.mulf %62, %65 : vector<16x1xf32>
    %67 = vector.broadcast %66 : vector<16x1xf32> to vector<16x32xf32>
    %68 = vector.broadcast %63 : vector<1x32xf32> to vector<16x32xf32>
    %69 = arith.mulf %67, %68 : vector<16x32xf32>
    %70 = vector.broadcast %64 : vector<1x32xf32> to vector<16x32xf32>
    %71 = arith.addf %69, %70 : vector<16x32xf32>
    %cst_27 = arith.constant -1.000000e+02 : f32
    %cst_28 = arith.constant 1.000000e+02 : f32
    %72 = vector.broadcast %cst_27 : f32 to vector<16x32xf32>
    %73 = arith.maximumf %72, %71 : vector<16x32xf32>
    %74 = vector.broadcast %cst_28 : f32 to vector<16x32xf32>
    %75 = arith.minimumf %74, %73 : vector<16x32xf32>
    %76 = math.cos %71 : vector<16x32xf32>
    %77 = vector.shape_cast %42 : vector<1x32xi1> to vector<1x32xi1>
    %78 = vector.broadcast %77 : vector<1x32xi1> to vector<16x32xi1>
    %79 = arith.select %78, %75, %76 : vector<16x32xi1>, vector<16x32xf32>
    %80 = arith.addf %61, %79 : vector<16x32xf32>
    %c0_i32_29 = arith.constant 0 : i32
    %c16_i32_30 = arith.constant 16 : i32
    %81 = arith.addi %c0_i32_29, %c16_i32_30 : i32
    %c1_i32_31 = arith.constant 1 : i32
    scf.for %arg16 = %c0_i32_29 to %81 step %c1_i32_31  : i32 {
      %c0_i32_45 = arith.constant 0 : i32
      %c0_i32_46 = arith.constant 0 : i32
      %c0_i32_47 = arith.constant 0 : i32
      %109 = tpu.memref_slice %arg5[%c0_i32_46, %c0_i32_47] : memref<128x32xf32, #tpu.memory_space<any>> -> memref<1x32xf32, #tpu.memory_space<any>>
      %c0_i32_48 = arith.constant 0 : i32
      %c0_i32_49 = arith.constant 0 : i32
      %110 = tpu.memref_slice %arg14[%c0_i32_48, %c0_i32_49] : memref<16x32xf32, #tpu.memory_space<vmem>> -> memref<1x32xf32, #tpu.memory_space<vmem>>
      %111 = tpu.memref_slice %arg15[%c0_i32_45] : memref<1x!tpu.dma_semaphore, #tpu.memory_space<semaphore_mem>> -> memref<1x!tpu.dma_semaphore, #tpu.memory_space<semaphore_mem>>
      %112 = tpu.memref_squeeze %111 : memref<1x!tpu.dma_semaphore, #tpu.memory_space<semaphore_mem>> -> memref<!tpu.dma_semaphore, #tpu.memory_space<semaphore_mem>>
      tpu.wait_dma2 semaphore(%112 : memref<!tpu.dma_semaphore, #tpu.memory_space<semaphore_mem>>) src(%109 : memref<1x32xf32, #tpu.memory_space<any>>) dst(%110 : memref<1x32xf32, #tpu.memory_space<vmem>>)
    }
    %c0_32 = arith.constant 0 : index
    %c0_33 = arith.constant 0 : index
    %82 = vector.load %arg14[%c0_32, %c0_33] : memref<16x32xf32, #tpu.memory_space<vmem>>, vector<16x32xf32>
    %83 = arith.addf %80, %82 : vector<16x32xf32>
    %cst_34 = arith.constant dense<0.000000e+00> : vector<16xf32>
    %84 = vector.multi_reduction <add>, %83, %cst_34 [1] : vector<16x32xf32> to vector<16xf32>
    %85 = vector.shape_cast %84 : vector<16xf32> to vector<16x1xf32>
    %cst_35 = arith.constant 3.200000e+01 : f32
    %86 = vector.broadcast %cst_35 : f32 to vector<16x1xf32>
    %87 = arith.divf %85, %86 : vector<16x1xf32>
    %88 = vector.broadcast %87 : vector<16x1xf32> to vector<16x32xf32>
    %89 = arith.subf %83, %88 : vector<16x32xf32>
    %90 = arith.mulf %89, %89 : vector<16x32xf32>
    %cst_36 = arith.constant dense<0.000000e+00> : vector<16xf32>
    %91 = vector.multi_reduction <add>, %90, %cst_36 [1] : vector<16x32xf32> to vector<16xf32>
    %92 = vector.shape_cast %91 : vector<16xf32> to vector<16x1xf32>
    %cst_37 = arith.constant 3.200000e+01 : f32
    %93 = vector.broadcast %cst_37 : f32 to vector<16x1xf32>
    %94 = arith.divf %92, %93 : vector<16x1xf32>
    %95 = vector.broadcast %87 : vector<16x1xf32> to vector<16x32xf32>
    %96 = arith.subf %83, %95 : vector<16x32xf32>
    %cst_38 = arith.constant 9.99999974E-6 : f32
    %97 = vector.broadcast %cst_38 : f32 to vector<16x1xf32>
    %98 = arith.addf %94, %97 : vector<16x1xf32>
    %99 = math.rsqrt %98 : vector<16x1xf32>
    %100 = vector.broadcast %99 : vector<16x1xf32> to vector<16x32xf32>
    %101 = arith.mulf %96, %100 : vector<16x32xf32>
    %c0_39 = arith.constant 0 : index
    %c0_40 = arith.constant 0 : index
    %102 = vector.load %arg11[%c0_39, %c0_40] : memref<1x32xf32, #tpu.memory_space<vmem>>, vector<1x32xf32>
    %103 = vector.broadcast %102 : vector<1x32xf32> to vector<16x32xf32>
    %104 = arith.mulf %101, %103 : vector<16x32xf32>
    %c0_41 = arith.constant 0 : index
    %c0_42 = arith.constant 0 : index
    %105 = vector.load %arg12[%c0_41, %c0_42] : memref<1x32xf32, #tpu.memory_space<vmem>>, vector<1x32xf32>
    %106 = vector.broadcast %105 : vector<1x32xf32> to vector<16x32xf32>
    %107 = arith.addf %104, %106 : vector<16x32xf32>
    %c0_43 = arith.constant 0 : index
    %c0_44 = arith.constant 0 : index
    %108 = vector.load %arg13[%c0_43, %c0_44] : memref<16x32xf32, #tpu.memory_space<vmem>>, vector<16x32xf32>
    tpu.vector_store %arg13[%c0_43, %c0_44], %107 {strides = array<i32>} : memref<16x32xf32, #tpu.memory_space<vmem>>, vector<16x32xf32>,
    return
  }
  func.func @transform_0(%arg0: i32, %arg1: memref<16xi32, #tpu.memory_space<smem>>) -> (i32, i32) {
    %c0_i32 = arith.constant 0 : i32
    %c0_i32_0 = arith.constant 0 : i32
    return %arg0, %c0_i32 : i32, i32
  }
  func.func @transform_1(%arg0: i32, %arg1: memref<16xi32, #tpu.memory_space<smem>>) -> (i32, i32) {
    %c0_i32 = arith.constant 0 : i32
    %c0_i32_0 = arith.constant 0 : i32
    return %arg0, %c0_i32 : i32, i32
  }
  func.func @transform_2(%arg0: i32, %arg1: memref<16xi32, #tpu.memory_space<smem>>) -> (i32, i32) {
    %c0_i32 = arith.constant 0 : i32
    %c0_i32_0 = arith.constant 0 : i32
    return %arg0, %c0_i32 : i32, i32
  }
  func.func @transform_4(%arg0: i32, %arg1: memref<16xi32, #tpu.memory_space<smem>>) -> (i32, i32) {
    %c0_i32 = arith.constant 0 : i32
    %c0_i32_0 = arith.constant 0 : i32
    %c0_i32_1 = arith.constant 0 : i32
    return %c0_i32, %c0_i32_0 : i32, i32
  }
  func.func @transform_5(%arg0: i32, %arg1: memref<16xi32, #tpu.memory_space<smem>>) -> (i32, i32) {
    %c0_i32 = arith.constant 0 : i32
    %c0_i32_0 = arith.constant 0 : i32
    %c0_i32_1 = arith.constant 0 : i32
    return %c0_i32, %c0_i32_0 : i32, i32
  }
  func.func @transform_6(%arg0: i32, %arg1: memref<16xi32, #tpu.memory_space<smem>>) -> (i32, i32) {
    %c0_i32 = arith.constant 0 : i32
    %c0_i32_0 = arith.constant 0 : i32
    %c0_i32_1 = arith.constant 0 : i32
    return %c0_i32, %c0_i32_0 : i32, i32
  }
  func.func @transform_7(%arg0: i32, %arg1: memref<16xi32, #tpu.memory_space<smem>>) -> (i32, i32) {
    %c0_i32 = arith.constant 0 : i32
    %c0_i32_0 = arith.constant 0 : i32
    %c0_i32_1 = arith.constant 0 : i32
    return %c0_i32, %c0_i32_0 : i32, i32
  }
  func.func @transform_8(%arg0: i32, %arg1: memref<16xi32, #tpu.memory_space<smem>>) -> (i32, i32) {
    %c0_i32 = arith.constant 0 : i32
    %c0_i32_0 = arith.constant 0 : i32
    %c0_i32_1 = arith.constant 0 : i32
    return %c0_i32, %c0_i32_0 : i32, i32
  }
  func.func @transform_9(%arg0: i32, %arg1: memref<16xi32, #tpu.memory_space<smem>>) -> (i32, i32) {
    %c0_i32 = arith.constant 0 : i32
    %c0_i32_0 = arith.constant 0 : i32
    %c0_i32_1 = arith.constant 0 : i32
    return %c0_i32, %c0_i32_0 : i32, i32
  }
  func.func @transform_10(%arg0: i32, %arg1: memref<16xi32, #tpu.memory_space<smem>>) -> (i32, i32) {
    %c0_i32 = arith.constant 0 : i32
    %c0_i32_0 = arith.constant 0 : i32
    %c0_i32_1 = arith.constant 0 : i32
    return %c0_i32, %c0_i32_0 : i32, i32
  }
  func.func @transform_11(%arg0: i32, %arg1: memref<16xi32, #tpu.memory_space<smem>>) -> (i32, i32) {
    %c0_i32 = arith.constant 0 : i32
    %c0_i32_0 = arith.constant 0 : i32
    return %arg0, %c0_i32 : i32, i32
  }
}

</mosaic_0001>

<llo_original>
// kernel: ehr_embeddings.1
$region0: #{ehr_embeddings.1}
  #allocation0 [shape = 'u32[]', space=smem, size = 0x4, offset = 0x4, fixed_abs, tag = 'smem constant byte address 0x4 - core index']
  #allocation1 [shape = 'u32[144,128]{1,0:T(1,128)}', space=vmem, size = 0x12000, scoped, tag = 'internal scratch']
  #allocation2 [shape = 'f32[16,32]{1,0:T(8,128)}', space=vmem, size = 0x2000, scoped, tag = 'scratch operand']
  #allocation3 [shape = 's32[1]{0}', space=sflag, size = 0x4, scoped, tag = 'scratch operand']
  #allocation4 [shape = 's32[1]{0}', space=sflag, size = 0x4, scoped, tag = 'scoped memory for ehr_embeddings.1']
  #allocation5 [shape = 'u8[512]{0}', space=smem, size = 0x200, scoped, tag = 'prefetched SMEM operand 0']
  #allocation8 [shape = 's32[]', space=sflag, size = 0x4, offset = 0, fixed_abs, tag = 'sflag constant byte address 0x0 - dummy sync flag']
  %s0 = inlined_call_operand.vmem [shape: s32[16], index: 0, kind: input, shape index: {}]
  %s1 = inlined_call_operand.vmem [shape: s32[16,1], index: 1, kind: input, shape index: {}]
  %s2 = inlined_call_operand.vmem [shape: f32[16,1], index: 2, kind: input, shape index: {}]
  %s3 = inlined_call_operand.vmem [shape: f32[16,1], index: 3, kind: input, shape index: {}]
  %s4 = inlined_call_operand.vmem [shape: f32[128,32], index: 4, kind: input, shape index: {}]
  %s5 = inlined_call_operand.vmem [shape: f32[4,32], index: 5, kind: input, shape index: {}]
  %s6 = inlined_call_operand.vmem [shape: f32[1,32], index: 6, kind: input, shape index: {}]
  %s7 = inlined_call_operand.vmem [shape: f32[1,32], index: 7, kind: input, shape index: {}]
  %s8 = inlined_call_operand.vmem [shape: f32[1,32], index: 8, kind: input, shape index: {}]
  %s9 = inlined_call_operand.vmem [shape: f32[1,32], index: 9, kind: input, shape index: {}]
  %s10 = inlined_call_operand.vmem [shape: f32[1,32], index: 10, kind: input, shape index: {}]
  %s11 = inlined_call_operand.vmem [shape: f32[1,32], index: 11, kind: input, shape index: {}]
  %s12 = inlined_call_operand.hbm [shape: f32[16,32], index: 12, kind: output, shape index: {}]
  %s13 = sld [smem:[#allocation0]]
  $region94: #{ehr_embeddings.1} parent=0
    _
  %s15 = ssub.s32 1, %s13
  %s16 = scalar_select 0, %s15, %s13
  %s17 = sshll.u32 %s0, 4
  %s18 = int_to_ptr.vmem [resolvable:$true] %s17
  %20 = dma.vmem_to_smem %s18, 16, [#allocation5], [#allocation4]
  %21 = dma.done [#allocation4], 16
  %22 = sfence
  $region1: #{ehr_embeddings.1} parent=0
    #allocation6 [shape = 'u8[8192]{0}', space=vmem, size = 0x2000, scoped, tag = 'output window, operand 0, single buffered']
    #allocation7 [shape = 's32[1]{0}', space=sflag, size = 0x4, scoped, tag = 'scoped memory for ehr_embeddings.1']
    %23 = vsyncpa [#allocation7], 0
    // Predicated region
    $region2: #{ehr_embeddings.1} parent=1 // pred_check
      _
    $region3: #{ehr_embeddings.1} parent=1 // pred_check_branch
      %25 = sbr.rel (0) target = $region5
    $region4: #{ehr_embeddings.1} parent=1 // pred_region
      _
    $region5: #{ehr_embeddings.1} parent=1 // pred_fallthru
      _
    // Predicated region
    $region6: #{ehr_embeddings.1} parent=1 // pred_check
      _
    $region7: #{ehr_embeddings.1} parent=1 // pred_check_branch
      %27 = sbr.rel (0) target = $region9
    $region8: #{ehr_embeddings.1} parent=1 // pred_region
      _
    $region9: #{ehr_embeddings.1} parent=1 // pred_fallthru
      _
    // Predicated region
    $region10: #{ehr_embeddings.1} parent=1 // pred_check
      _
    $region11: #{ehr_embeddings.1} parent=1 // pred_check_branch
      %29 = sbr.rel (0) target = $region13
    $region12: #{ehr_embeddings.1} parent=1 // pred_region
      _
    $region13: #{ehr_embeddings.1} parent=1 // pred_fallthru
      _
    // Predicated region
    $region14: #{ehr_embeddings.1} parent=1 // pred_check
      _
    $region15: #{ehr_embeddings.1} parent=1 // pred_check_branch
      %31 = sbr.rel (0) target = $region17
    $region16: #{ehr_embeddings.1} parent=1 // pred_region
      _
    $region17: #{ehr_embeddings.1} parent=1 // pred_fallthru
      _
    // Predicated region
    $region18: #{ehr_embeddings.1} parent=1 // pred_check
      _
    $region19: #{ehr_embeddings.1} parent=1 // pred_check_branch
      %33 = sbr.rel (0) target = $region21
    $region20: #{ehr_embeddings.1} parent=1 // pred_region
      _
    $region21: #{ehr_embeddings.1} parent=1 // pred_fallthru
      _
    // Predicated region
    $region22: #{ehr_embeddings.1} parent=1 // pred_check
      _
    $region23: #{ehr_embeddings.1} parent=1 // pred_check_branch
      %35 = sbr.rel (0) target = $region25
    $region24: #{ehr_embeddings.1} parent=1 // pred_region
      _
    $region25: #{ehr_embeddings.1} parent=1 // pred_fallthru
      _
    // Predicated region
    $region26: #{ehr_embeddings.1} parent=1 // pred_check
      _
    $region27: #{ehr_embeddings.1} parent=1 // pred_check_branch
      %37 = sbr.rel (0) target = $region29
    $region28: #{ehr_embeddings.1} parent=1 // pred_region
      _
    $region29: #{ehr_embeddings.1} parent=1 // pred_fallthru
      _
    // Predicated region
    $region30: #{ehr_embeddings.1} parent=1 // pred_check
      _
    $region31: #{ehr_embeddings.1} parent=1 // pred_check_branch
      %39 = sbr.rel (0) target = $region33
    $region32: #{ehr_embeddings.1} parent=1 // pred_region
      _
    $region33: #{ehr_embeddings.1} parent=1 // pred_fallthru
      _
    // Predicated region
    $region34: #{ehr_embeddings.1} parent=1 // pred_check
      _
    $region35: #{ehr_embeddings.1} parent=1 // pred_check_branch
      %41 = sbr.rel (0) target = $region37
    $region36: #{ehr_embeddings.1} parent=1 // pred_region
      _
    $region37: #{ehr_embeddings.1} parent=1 // pred_fallthru
      _
    // Predicated region
    $region38: #{ehr_embeddings.1} parent=1 // pred_check
      _
    $region39: #{ehr_embeddings.1} parent=1 // pred_check_branch
      %43 = sbr.rel (0) target = $region41
    $region40: #{ehr_embeddings.1} parent=1 // pred_region
      _
    $region41: #{ehr_embeddings.1} parent=1 // pred_fallthru
      _
    %s44 = smul.u32 0, 16
    loop: start=0, step=1, limit=16
    $region42: #{ehr_embeddings.1} parent=1 // loop_pre_header
      _
    $region43: #{ehr_embeddings.1} parent=1 // loop_header
      %s46 = sphi 0, %s50
      %p47 = scmp.ge.s32.totalorder %s46, 16
    $region44: #{ehr_embeddings.1} parent=1 // loop_header_branch
      %49 = sbr.rel (%p47) target = $region48
    $region45: #{ehr_embeddings.1} parent=1 // loop_body
      %s51 = sadd.s32 %s44, %s46
      %s52 = sld [smem:[#allocation5 + %s51]]
      %s53 = scalar_lea.vmem %s4, %s52
      %s54 = scalar_lea.vmem [#allocation2], %s46
      %p56 = scmp.lt.u32.totalorder 1, 8
      %p57 = pneg %p56
      // Predicated region
      $region49: #{ehr_embeddings.1} parent=45 // pred_check
        _
      $region50: #{ehr_embeddings.1} parent=45 // pred_check_branch
        %59 = sbr.rel (%p56) target = $region52
      $region51: #{ehr_embeddings.1} parent=45 // pred_region
        %s74 = sand.u32 1, 7
        %p75 = scmp.eq.s32.totalorder %s74, 0
        %p76 = pneg %p75
        // Predicated region
        $region64: #{ehr_embeddings.1} parent=51 // pred_check
          _
        $region65: #{ehr_embeddings.1} parent=51 // pred_check_branch
          %78 = sbr.rel (%p75) target = $region67
        $region66: #{ehr_embeddings.1} parent=51 // pred_region
          %s79 = sand.u32 1, 7
          %s80 = ssub.s32 1, %s79
          %s81 = scalar_lea.vmem %s53, %s80
          %s82 = ssub.s32 1, %s79
          %s83 = scalar_lea.vmem %s54, %s82 [#allocation2]
          %s84 = sshllo.u32 0, %s79
          loop: start=0, step=1, limit=1
          $region68: #{ehr_embeddings.1} parent=66 // loop_pre_header
            _
          $region69: #{ehr_embeddings.1} parent=66 // loop_header
            %s86 = sphi 0, %s90
            %p87 = scmp.ge.s32.totalorder %s86, 1
            %s91 = sphi %s81, %s81
            %s92 = sphi %s83, %s83
          $region70: #{ehr_embeddings.1} parent=66 // loop_header_branch
            %89 = sbr.rel (%p87) target = $region74
          $region71: #{ehr_embeddings.1} parent=66 // loop_body
            %v93 = vld [vmem:[%s91] sm:%s84]
            %94 = vst [vmem:[%s92] sm:%s84] %v93
          $region72: #{ehr_embeddings.1} parent=66 // loop_footer
            %s90 = sadd.s32 1, %s86
          $region73: #{ehr_embeddings.1} parent=66 // loop_footer_branch
            %85 = sbr.rel target = $region69
          $region74: #{ehr_embeddings.1} parent=66 // loop_exit
            _
        $region67: #{ehr_embeddings.1} parent=51 // pred_fallthru
          _
      $region52: #{ehr_embeddings.1} parent=45 // pred_fallthru
        _
      // Predicated region
      $region53: #{ehr_embeddings.1} parent=45 // pred_check
        %p60 = pneg %p56
      $region54: #{ehr_embeddings.1} parent=45 // pred_check_branch
        %62 = sbr.rel (%p60) target = $region56
      $region55: #{ehr_embeddings.1} parent=45 // pred_region
        %s63 = sshllo.u32 0, 1
        loop: start=0, step=1, limit=1
        $region57: #{ehr_embeddings.1} parent=55 // loop_pre_header
          _
        $region58: #{ehr_embeddings.1} parent=55 // loop_header
          %s65 = sphi 0, %s69
          %p66 = scmp.ge.s32.totalorder %s65, 1
          %s70 = sphi %s53, %s53
          %s71 = sphi %s54, %s54
        $region59: #{ehr_embeddings.1} parent=55 // loop_header_branch
          %68 = sbr.rel (%p66) target = $region63
        $region60: #{ehr_embeddings.1} parent=55 // loop_body
          %v72 = vld [vmem:[%s70] sm:%s63]
          %73 = vst [vmem:[%s71] sm:%s63] %v72
        $region61: #{ehr_embeddings.1} parent=55 // loop_footer
          %s69 = sadd.s32 1, %s65
        $region62: #{ehr_embeddings.1} parent=55 // loop_footer_branch
          %64 = sbr.rel target = $region58
        $region63: #{ehr_embeddings.1} parent=55 // loop_exit
          _
      $region56: #{ehr_embeddings.1} parent=45 // pred_fallthru
        _
      // Predicated region
      $region75: #{ehr_embeddings.1} parent=45 // pred_check
        _
      $region76: #{ehr_embeddings.1} parent=45 // pred_check_branch
        %97 = sbr.rel (0) target = $region78
      $region77: #{ehr_embeddings.1} parent=45 // pred_region
        %98 = vsyncadd [#allocation3], 16
      $region78: #{ehr_embeddings.1} parent=45 // pred_fallthru
        _
    $region46: #{ehr_embeddings.1} parent=1 // loop_footer
      %s50 = sadd.s32 1, %s46
    $region47: #{ehr_embeddings.1} parent=1 // loop_footer_branch
      %45 = sbr.rel target = $region43
    $region48: #{ehr_embeddings.1} parent=1 // loop_exit
      _
    %v99 = vld [vmem:[%s1] sm:$0xff]
    %v100 = vld [vmem:[%s1 + $0x8] sm:$0xff]
    %vm101 = vcmp.eq.s32.totalorder %v99, 0
    %vm102 = vcmp.eq.s32.totalorder %v100, 0
    %v103 = vsel %vm101, 1, 0
    %v104 = vsel %vm102, 1, 0
    %v105 = vcvt.s32.f32 %v103
    %v106 = vcvt.s32.f32 %v104
    %v107 = vld [vmem:[%s5] sm:$0x1]
    %109 = vset.pattern.permute.xlu0 0
    %110 = vperm.xlu0 %109, %v105
    %v111 = vpop.permute.xlu0 %110
    %114 = vset.pattern.permute.xlu0 0
    %115 = vperm.xlu0 %114, %v106
    %v116 = vpop.permute.xlu0 %115
    %v118 = vlaneseq
    %v119 = vshrl.u32 %v118, 7
    %v120 = vsub.s32 0, %v119
    %v121 = vrot.slane %v107, %v120
    %v122 = vmul.f32 %v111, %v121
    %v123 = vmul.f32 %v116, %v121
    %v124 = vadd.f32 %v122, 0.0
    %v125 = vadd.f32 %v123, 0.0
    %vm126 = vcmp.eq.s32.totalorder %v99, 1
    %vm127 = vcmp.eq.s32.totalorder %v100, 1
    %v128 = vsel %vm126, 1, 0
    %v129 = vsel %vm127, 1, 0
    %v130 = vcvt.s32.f32 %v128
    %v131 = vcvt.s32.f32 %v129
    %v132 = vld [vmem:[%s5 + $0x1] sm:$0x1]
    %134 = vset.pattern.permute.xlu0 0
    %135 = vperm.xlu0 %134, %v130
    %v136 = vpop.permute.xlu0 %135
    %139 = vset.pattern.permute.xlu0 0
    %140 = vperm.xlu0 %139, %v131
    %v141 = vpop.permute.xlu0 %140
    %v143 = vlaneseq
    %v144 = vshrl.u32 %v143, 7
    %v145 = vsub.s32 0, %v144
    %v146 = vrot.slane %v132, %v145
    %v147 = vmul.f32 %v136, %v146
    %v148 = vmul.f32 %v141, %v146
    %v149 = vadd.f32 %v124, %v147
    %v150 = vadd.f32 %v125, %v148
    %vm151 = vcmp.eq.s32.totalorder %v99, 2
    %vm152 = vcmp.eq.s32.totalorder %v100, 2
    %v153 = vsel %vm151, 1, 0
    %v154 = vsel %vm152, 1, 0
    %v155 = vcvt.s32.f32 %v153
    %v156 = vcvt.s32.f32 %v154
    %v157 = vld [vmem:[%s5 + $0x2] sm:$0x1]
    %159 = vset.pattern.permute.xlu0 0
    %160 = vperm.xlu0 %159, %v155
    %v161 = vpop.permute.xlu0 %160
    %164 = vset.pattern.permute.xlu0 0
    %165 = vperm.xlu0 %164, %v156
    %v166 = vpop.permute.xlu0 %165
    %v168 = vlaneseq
    %v169 = vshrl.u32 %v168, 7
    %v170 = vsub.s32 0, %v169
    %v171 = vrot.slane %v157, %v170
    %v172 = vmul.f32 %v161, %v171
    %v173 = vmul.f32 %v166, %v171
    %v174 = vadd.f32 %v149, %v172
    %v175 = vadd.f32 %v150, %v173
    %vm176 = vcmp.eq.s32.totalorder %v99, 3
    %vm177 = vcmp.eq.s32.totalorder %v100, 3
    %v178 = vsel %vm176, 1, 0
    %v179 = vsel %vm177, 1, 0
    %v180 = vcvt.s32.f32 %v178
    %v181 = vcvt.s32.f32 %v179
    %v182 = vld [vmem:[%s5 + $0x3] sm:$0x1]
    %184 = vset.pattern.permute.xlu0 0
    %185 = vperm.xlu0 %184, %v180
    %v186 = vpop.permute.xlu0 %185
    %189 = vset.pattern.permute.xlu0 0
    %190 = vperm.xlu0 %189, %v181
    %v191 = vpop.permute.xlu0 %190
    %v193 = vlaneseq
    %v194 = vshrl.u32 %v193, 7
    %v195 = vsub.s32 0, %v194
    %v196 = vrot.slane %v182, %v195
    %v197 = vmul.f32 %v186, %v196
    %v198 = vmul.f32 %v191, %v196
    %v199 = vadd.f32 %v174, %v197
    %v200 = vadd.f32 %v175, %v198
    %v201 = vlaneseq
    %v202 = vand.u32 %v201, 127
    %vm203 = vcmp.eq.s32.totalorder %v202, 0
    %v204 = vld [vmem:[%s2] sm:$0xff]
    %v205 = vld [vmem:[%s2 + $0x8] sm:$0xff]
    %v206 = vld [vmem:[%s6] sm:$0x1]
    %v207 = vld [vmem:[%s7] sm:$0x1]
    %v208 = vmul.f32 %v204, 0.01
    %v209 = vmul.f32 %v205, 0.01
    %211 = vset.pattern.permute.xlu0 0
    %212 = vperm.xlu0 %211, %v208
    %v213 = vpop.permute.xlu0 %212
    %216 = vset.pattern.permute.xlu0 0
    %217 = vperm.xlu0 %216, %v209
    %v218 = vpop.permute.xlu0 %217
    %v221 = vlaneseq
    %v222 = vshrl.u32 %v221, 7
    %v223 = vsub.s32 0, %v222
    %v224 = vrot.slane %v206, %v223
    %v226 = vmul.f32 %v213, %v224
    %v227 = vmul.f32 %v218, %v224
    %v229 = vlaneseq
    %v230 = vshrl.u32 %v229, 7
    %v231 = vsub.s32 0, %v230
    %v232 = vrot.slane %v207, %v231
    %v234 = vadd.f32 %v226, %v232
    %v235 = vadd.f32 %v227, %v232
    %v236 = vmax.f32 %v234, -100.0
    %v237 = vmax.f32 %v235, -100.0
    %v238 = vmin.f32 %v236, 100.0
    %v239 = vmin.f32 %v237, 100.0
    %v240 = vand.u32 2147483647, %v234
    %vm241 = vcmp.le.f32.partialorder %v240, 0.7853982
    %vm242 = vcmp.lt.s32.totalorder %v234, 0
    %v243 = vand.u32 %v234, 2139095040
    %v244 = vshrl.u32 %v243, 23
    %v245 = vsub.s32 %v244, 127
    %v246 = vand.u32 2147483647, %v234
    %v247 = vand.u32 %v246, 8388607
    %v248 = vor.u32 %v247, 8388608
    %v249 = vsub.s32 0, %v248
    %v250 = vadd.s32 %v245, 1
    %vm251 = vcmp.gt.s32.totalorder %v250, 0
    %v252 = vsel %vm251, %v250, 0
    %v253 = vshrl.u32 %v252, 5
    %v254 = vand.u32 %v252, 31
    %v255 = vsub.s32 32, %v254
    %v256 = vshrl.u32 683565275, %v255
    %v257 = vshll.u32 683565275, %v254
    %v258 = vshrl.u32 2475754826, %v255
    %v259 = vor.u32 %v257, %v258
    %v260 = vshll.u32 2475754826, %v254
    %v261 = vshrl.u32 2131351028, %v255
    %v262 = vor.u32 %v260, %v261
    %v263 = vshll.u32 2131351028, %v254
    %v264 = vshrl.u32 2102212464, %v255
    %v265 = vor.u32 %v263, %v264
    %v266 = vshll.u32 2102212464, %v254
    %v267 = vshrl.u32 920167782, %v255
    %v268 = vor.u32 %v266, %v267
    %v269 = vshll.u32 920167782, %v254
    %v270 = vshrl.u32 1326507024, %v255
    %v271 = vor.u32 %v269, %v270
    %vm272 = vcmp.lt.s32.totalorder %v253, 1
    %vm273 = vcmp.lt.s32.totalorder %v253, 2
    %vm274 = vcmp.lt.s32.totalorder %v253, 3
    %vm275 = vcmp.lt.s32.totalorder %v253, 4
    %v276 = vsel %vm272, %v256, %v259
    %v277 = vsel %vm275, %v265, 2102212464
    %v278 = vsel %vm274, %v262, %v277
    %v279 = vsel %vm273, %v276, %v278
    %v280 = vsel %vm272, %v259, %v262
    %v281 = vsel %vm275, %v268, 920167782
    %v282 = vsel %vm274, %v265, %v281
    %v283 = vsel %vm273, %v280, %v282
    %v284 = vsel %vm272, %v262, %v265
    %v285 = vsel %vm275, %v271, 1326507024
    %v286 = vsel %vm274, %v268, %v285
    %v287 = vsel %vm273, %v284, %v286
    %v288 = vshll.u32 %v248, 8
    %v289 = vmul.u32.u64.compose %v288, %v287
    %v290 = vextract.low.u32 %v289
    %v291 = vextract.high.u32 %v289
    %v292 = vmul.u32.u64.compose %v288, %v283
    %v293 = vextract.low.u32 %v292
    %v294 = vextract.high.u32 %v292
    %v295 = vmul.u32 %v288, %v279
    %v296 = vadd.s32 %v291, %v293
    %vm297 = vc.u32 %v291, %v293
    %v298 = vadd.s32 %v294, 1
    %v299 = vsel %vm297, %v298, %v294
    %v300 = vadd.s32 %v295, %v299
    %v301 = vadd.s32 %v300, 536870912
    %v302 = vshrl.u32 %v301, 30
    %v303 = vshll.u32 %v302, 30
    %v304 = vsub.s32 %v300, %v303
    %vm305 = vcmp.lt.s32.totalorder %v304, 0
    %v306 = vsub.s32 0, %v304
    %v307 = vsel %vm305, %v306, %v304
    %v308 = vclz %v307
    %v309 = vsub.s32 %v308, 2
    %vm310 = vcmp.gt.s32.totalorder 0, %v309
    %v311 = vsel %vm310, 0, %v309
    %v312 = vsub.s32 32, %v311
    %v313 = vshll.u32 %v304, %v311
    %v314 = vshrl.u32 %v296, %v312
    %v315 = vor.u32 %v313, %v314
    %v316 = vsub.s32 4294967266, %v311
    %v317 = vadd.s32 %v316, 127
    %v318 = vshll.u32 %v317, 23
    %v319 = vor.u32 4788187, %v318
    %v320 = vand.u32 2147483647, %v319
    %v322 = vcvt.s32.f32 %v315
    %v323 = vmul.f32 %v322, %v320
    %v324 = vxor.u32 %v323, 2147483648
    %v325 = vsel %vm242, %v324, %v323
    %v326 = vsub.s32 4, %v302
    %v327 = vsel %vm242, %v326, %v302
    %v328 = vsel %vm241, %v234, %v325
    %v329 = vsel %vm241, 0, %v327
    %v330 = vcosq.f32.pop %v328
    %v331 = vsinq.f32.pop %v328
    %vm332 = vweird.f32 %v234
    %v333 = vand.u32 %v329, 3
    %vm334 = vcmp.lt.s32.totalorder %v333, 2
    %vm335 = vcmp.eq.s32.totalorder %v333, 0
    %v336 = vxor.u32 %v331, 2147483648
    %v337 = vsel %vm335, %v330, %v336
    %vm338 = vcmp.eq.s32.totalorder %v333, 2
    %v339 = vxor.u32 %v330, 2147483648
    %v340 = vsel %vm338, %v339, %v331
    %v341 = vsel %vm334, %v337, %v340
    %v342 = vsel %vm332, nan, %v341
    %v343 = vand.u32 2147483647, %v235
    %vm344 = vcmp.le.f32.partialorder %v343, 0.7853982
    %vm345 = vcmp.lt.s32.totalorder %v235, 0
    %v346 = vand.u32 %v235, 2139095040
    %v347 = vshrl.u32 %v346, 23
    %v348 = vsub.s32 %v347, 127
    %v349 = vand.u32 2147483647, %v235
    %v350 = vand.u32 %v349, 8388607
    %v351 = vor.u32 %v350, 8388608
    %v352 = vsub.s32 0, %v351
    %v353 = vadd.s32 %v348, 1
    %vm354 = vcmp.gt.s32.totalorder %v353, 0
    %v355 = vsel %vm354, %v353, 0
    %v356 = vshrl.u32 %v355, 5
    %v357 = vand.u32 %v355, 31
    %v358 = vsub.s32 32, %v357
    %v359 = vshrl.u32 683565275, %v358
    %v360 = vshll.u32 683565275, %v357
    %v361 = vshrl.u32 2475754826, %v358
    %v362 = vor.u32 %v360, %v361
    %v363 = vshll.u32 2475754826, %v357
    %v364 = vshrl.u32 2131351028, %v358
    %v365 = vor.u32 %v363, %v364
    %v366 = vshll.u32 2131351028, %v357
    %v367 = vshrl.u32 2102212464, %v358
    %v368 = vor.u32 %v366, %v367
    %v369 = vshll.u32 2102212464, %v357
    %v370 = vshrl.u32 920167782, %v358
    %v371 = vor.u32 %v369, %v370
    %v372 = vshll.u32 920167782, %v357
    %v373 = vshrl.u32 1326507024, %v358
    %v374 = vor.u32 %v372, %v373
    %vm375 = vcmp.lt.s32.totalorder %v356, 1
    %vm376 = vcmp.lt.s32.totalorder %v356, 2
    %vm377 = vcmp.lt.s32.totalorder %v356, 3
    %vm378 = vcmp.lt.s32.totalorder %v356, 4
    %v379 = vsel %vm375, %v359, %v362
    %v380 = vsel %vm378, %v368, 2102212464
    %v381 = vsel %vm377, %v365, %v380
    %v382 = vsel %vm376, %v379, %v381
    %v383 = vsel %vm375, %v362, %v365
    %v384 = vsel %vm378, %v371, 920167782
    %v385 = vsel %vm377, %v368, %v384
    %v386 = vsel %vm376, %v383, %v385
    %v387 = vsel %vm375, %v365, %v368
    %v388 = vsel %vm378, %v374, 1326507024
    %v389 = vsel %vm377, %v371, %v388
    %v390 = vsel %vm376, %v387, %v389
    %v391 = vshll.u32 %v351, 8
    %v392 = vmul.u32.u64.compose %v391, %v390
    %v393 = vextract.low.u32 %v392
    %v394 = vextract.high.u32 %v392
    %v395 = vmul.u32.u64.compose %v391, %v386
    %v396 = vextract.low.u32 %v395
    %v397 = vextract.high.u32 %v395
    %v398 = vmul.u32 %v391, %v382
    %v399 = vadd.s32 %v394, %v396
    %vm400 = vc.u32 %v394, %v396
    %v401 = vadd.s32 %v397, 1
    %v402 = vsel %vm400, %v401, %v397
    %v403 = vadd.s32 %v398, %v402
    %v404 = vadd.s32 %v403, 536870912
    %v405 = vshrl.u32 %v404, 30
    %v406 = vshll.u32 %v405, 30
    %v407 = vsub.s32 %v403, %v406
    %vm408 = vcmp.lt.s32.totalorder %v407, 0
    %v409 = vsub.s32 0, %v407
    %v410 = vsel %vm408, %v409, %v407
    %v411 = vclz %v410
    %v412 = vsub.s32 %v411, 2
    %vm413 = vcmp.gt.s32.totalorder 0, %v412
    %v414 = vsel %vm413, 0, %v412
    %v415 = vsub.s32 32, %v414
    %v416 = vshll.u32 %v407, %v414
    %v417 = vshrl.u32 %v399, %v415
    %v418 = vor.u32 %v416, %v417
    %v419 = vsub.s32 4294967266, %v414
    %v420 = vadd.s32 %v419, 127
    %v421 = vshll.u32 %v420, 23
    %v422 = vor.u32 4788187, %v421
    %v423 = vand.u32 2147483647, %v422
    %v425 = vcvt.s32.f32 %v418
    %v426 = vmul.f32 %v425, %v423
    %v427 = vxor.u32 %v426, 2147483648
    %v428 = vsel %vm345, %v427, %v426
    %v429 = vsub.s32 4, %v405
    %v430 = vsel %vm345, %v429, %v405
    %v431 = vsel %vm344, %v235, %v428
    %v432 = vsel %vm344, 0, %v430
    %v433 = vcosq.f32.pop %v431
    %v434 = vsinq.f32.pop %v431
    %vm435 = vweird.f32 %v235
    %v436 = vand.u32 %v432, 3
    %vm437 = vcmp.lt.s32.totalorder %v436, 2
    %vm438 = vcmp.eq.s32.totalorder %v436, 0
    %v439 = vxor.u32 %v434, 2147483648
    %v440 = vsel %vm438, %v433, %v439
    %vm441 = vcmp.eq.s32.totalorder %v436, 2
    %v442 = vxor.u32 %v433, 2147483648
    %v443 = vsel %vm441, %v442, %v434
    %v444 = vsel %vm437, %v440, %v443
    %v445 = vsel %vm435, nan, %v444
    %v446 = vsel %vm203, 1, 0
    %vm447 = vcmp.eq.s32.totalorder %v446, 1
    %v448 = vsel %vm447, %v238, %v342
    %v449 = vsel %vm447, %v239, %v445
    %v450 = vadd.f32 %v199, %v448
    %v451 = vadd.f32 %v200, %v449
    %v452 = vld [vmem:[%s3] sm:$0xff]
    %v453 = vld [vmem:[%s3 + $0x8] sm:$0xff]
    %v454 = vld [vmem:[%s8] sm:$0x1]
    %v455 = vld [vmem:[%s9] sm:$0x1]
    %v456 = vmul.f32 %v452, 0.0001
    %v457 = vmul.f32 %v453, 0.0001
    %459 = vset.pattern.permute.xlu0 0
    %460 = vperm.xlu0 %459, %v456
    %v461 = vpop.permute.xlu0 %460
    %464 = vset.pattern.permute.xlu0 0
    %465 = vperm.xlu0 %464, %v457
    %v466 = vpop.permute.xlu0 %465
    %v469 = vlaneseq
    %v470 = vshrl.u32 %v469, 7
    %v471 = vsub.s32 0, %v470
    %v472 = vrot.slane %v454, %v471
    %v474 = vmul.f32 %v461, %v472
    %v475 = vmul.f32 %v466, %v472
    %v477 = vlaneseq
    %v478 = vshrl.u32 %v477, 7
    %v479 = vsub.s32 0, %v478
    %v480 = vrot.slane %v455, %v479
    %v482 = vadd.f32 %v474, %v480
    %v483 = vadd.f32 %v475, %v480
    %v484 = vmax.f32 %v482, -100.0
    %v485 = vmax.f32 %v483, -100.0
    %v486 = vmin.f32 %v484, 100.0
    %v487 = vmin.f32 %v485, 100.0
    %v488 = vand.u32 2147483647, %v482
    %vm489 = vcmp.le.f32.partialorder %v488, 0.7853982
    %vm490 = vcmp.lt.s32.totalorder %v482, 0
    %v491 = vand.u32 %v482, 2139095040
    %v492 = vshrl.u32 %v491, 23
    %v493 = vsub.s32 %v492, 127
    %v494 = vand.u32 2147483647, %v482
    %v495 = vand.u32 %v494, 8388607
    %v496 = vor.u32 %v495, 8388608
    %v497 = vsub.s32 0, %v496
    %v498 = vadd.s32 %v493, 1
    %vm499 = vcmp.gt.s32.totalorder %v498, 0
    %v500 = vsel %vm499, %v498, 0
    %v501 = vshrl.u32 %v500, 5
    %v502 = vand.u32 %v500, 31
    %v503 = vsub.s32 32, %v502
    %v504 = vshrl.u32 683565275, %v503
    %v505 = vshll.u32 683565275, %v502
    %v506 = vshrl.u32 2475754826, %v503
    %v507 = vor.u32 %v505, %v506
    %v508 = vshll.u32 2475754826, %v502
    %v509 = vshrl.u32 2131351028, %v503
    %v510 = vor.u32 %v508, %v509
    %v511 = vshll.u32 2131351028, %v502
    %v512 = vshrl.u32 2102212464, %v503
    %v513 = vor.u32 %v511, %v512
    %v514 = vshll.u32 2102212464, %v502
    %v515 = vshrl.u32 920167782, %v503
    %v516 = vor.u32 %v514, %v515
    %v517 = vshll.u32 920167782, %v502
    %v518 = vshrl.u32 1326507024, %v503
    %v519 = vor.u32 %v517, %v518
    %vm520 = vcmp.lt.s32.totalorder %v501, 1
    %vm521 = vcmp.lt.s32.totalorder %v501, 2
    %vm522 = vcmp.lt.s32.totalorder %v501, 3
    %vm523 = vcmp.lt.s32.totalorder %v501, 4
    %v524 = vsel %vm520, %v504, %v507
    %v525 = vsel %vm523, %v513, 2102212464
    %v526 = vsel %vm522, %v510, %v525
    %v527 = vsel %vm521, %v524, %v526
    %v528 = vsel %vm520, %v507, %v510
    %v529 = vsel %vm523, %v516, 920167782
    %v530 = vsel %vm522, %v513, %v529
    %v531 = vsel %vm521, %v528, %v530
    %v532 = vsel %vm520, %v510, %v513
    %v533 = vsel %vm523, %v519, 1326507024
    %v534 = vsel %vm522, %v516, %v533
    %v535 = vsel %vm521, %v532, %v534
    %v536 = vshll.u32 %v496, 8
    %v537 = vmul.u32.u64.compose %v536, %v535
    %v538 = vextract.low.u32 %v537
    %v539 = vextract.high.u32 %v537
    %v540 = vmul.u32.u64.compose %v536, %v531
    %v541 = vextract.low.u32 %v540
    %v542 = vextract.high.u32 %v540
    %v543 = vmul.u32 %v536, %v527
    %v544 = vadd.s32 %v539, %v541
    %vm545 = vc.u32 %v539, %v541
    %v546 = vadd.s32 %v542, 1
    %v547 = vsel %vm545, %v546, %v542
    %v548 = vadd.s32 %v543, %v547
    %v549 = vadd.s32 %v548, 536870912
    %v550 = vshrl.u32 %v549, 30
    %v551 = vshll.u32 %v550, 30
    %v552 = vsub.s32 %v548, %v551
    %vm553 = vcmp.lt.s32.totalorder %v552, 0
    %v554 = vsub.s32 0, %v552
    %v555 = vsel %vm553, %v554, %v552
    %v556 = vclz %v555
    %v557 = vsub.s32 %v556, 2
    %vm558 = vcmp.gt.s32.totalorder 0, %v557
    %v559 = vsel %vm558, 0, %v557
    %v560 = vsub.s32 32, %v559
    %v561 = vshll.u32 %v552, %v559
    %v562 = vshrl.u32 %v544, %v560
    %v563 = vor.u32 %v561, %v562
    %v564 = vsub.s32 4294967266, %v559
    %v565 = vadd.s32 %v564, 127
    %v566 = vshll.u32 %v565, 23
    %v567 = vor.u32 4788187, %v566
    %v568 = vand.u32 2147483647, %v567
    %v570 = vcvt.s32.f32 %v563
    %v571 = vmul.f32 %v570, %v568
    %v572 = vxor.u32 %v571, 2147483648
    %v573 = vsel %vm490, %v572, %v571
    %v574 = vsub.s32 4, %v550
    %v575 = vsel %vm490, %v574, %v550
    %v576 = vsel %vm489, %v482, %v573
    %v577 = vsel %vm489, 0, %v575
    %v578 = vcosq.f32.pop %v576
    %v579 = vsinq.f32.pop %v576
    %vm580 = vweird.f32 %v482
    %v581 = vand.u32 %v577, 3
    %vm582 = vcmp.lt.s32.totalorder %v581, 2
    %vm583 = vcmp.eq.s32.totalorder %v581, 0
    %v584 = vxor.u32 %v579, 2147483648
    %v585 = vsel %vm583, %v578, %v584
    %vm586 = vcmp.eq.s32.totalorder %v581, 2
    %v587 = vxor.u32 %v578, 2147483648
    %v588 = vsel %vm586, %v587, %v579
    %v589 = vsel %vm582, %v585, %v588
    %v590 = vsel %vm580, nan, %v589
    %v591 = vand.u32 2147483647, %v483
    %vm592 = vcmp.le.f32.partialorder %v591, 0.7853982
    %vm593 = vcmp.lt.s32.totalorder %v483, 0
    %v594 = vand.u32 %v483, 2139095040
    %v595 = vshrl.u32 %v594, 23
    %v596 = vsub.s32 %v595, 127
    %v597 = vand.u32 2147483647, %v483
    %v598 = vand.u32 %v597, 8388607
    %v599 = vor.u32 %v598, 8388608
    %v600 = vsub.s32 0, %v599
    %v601 = vadd.s32 %v596, 1
    %vm602 = vcmp.gt.s32.totalorder %v601, 0
    %v603 = vsel %vm602, %v601, 0
    %v604 = vshrl.u32 %v603, 5
    %v605 = vand.u32 %v603, 31
    %v606 = vsub.s32 32, %v605
    %v607 = vshrl.u32 683565275, %v606
    %v608 = vshll.u32 683565275, %v605
    %v609 = vshrl.u32 2475754826, %v606
    %v610 = vor.u32 %v608, %v609
    %v611 = vshll.u32 2475754826, %v605
    %v612 = vshrl.u32 2131351028, %v606
    %v613 = vor.u32 %v611, %v612
    %v614 = vshll.u32 2131351028, %v605
    %v615 = vshrl.u32 2102212464, %v606
    %v616 = vor.u32 %v614, %v615
    %v617 = vshll.u32 2102212464, %v605
    %v618 = vshrl.u32 920167782, %v606
    %v619 = vor.u32 %v617, %v618
    %v620 = vshll.u32 920167782, %v605
    %v621 = vshrl.u32 1326507024, %v606
    %v622 = vor.u32 %v620, %v621
    %vm623 = vcmp.lt.s32.totalorder %v604, 1
    %vm624 = vcmp.lt.s32.totalorder %v604, 2
    %vm625 = vcmp.lt.s32.totalorder %v604, 3
    %vm626 = vcmp.lt.s32.totalorder %v604, 4
    %v627 = vsel %vm623, %v607, %v610
    %v628 = vsel %vm626, %v616, 2102212464
    %v629 = vsel %vm625, %v613, %v628
    %v630 = vsel %vm624, %v627, %v629
    %v631 = vsel %vm623, %v610, %v613
    %v632 = vsel %vm626, %v619, 920167782
    %v633 = vsel %vm625, %v616, %v632
    %v634 = vsel %vm624, %v631, %v633
    %v635 = vsel %vm623, %v613, %v616
    %v636 = vsel %vm626, %v622, 1326507024
    %v637 = vsel %vm625, %v619, %v636
    %v638 = vsel %vm624, %v635, %v637
    %v639 = vshll.u32 %v599, 8
    %v640 = vmul.u32.u64.compose %v639, %v638
    %v641 = vextract.low.u32 %v640
    %v642 = vextract.high.u32 %v640
    %v643 = vmul.u32.u64.compose %v639, %v634
    %v644 = vextract.low.u32 %v643
    %v645 = vextract.high.u32 %v643
    %v646 = vmul.u32 %v639, %v630
    %v647 = vadd.s32 %v642, %v644
    %vm648 = vc.u32 %v642, %v644
    %v649 = vadd.s32 %v645, 1
    %v650 = vsel %vm648, %v649, %v645
    %v651 = vadd.s32 %v646, %v650
    %v652 = vadd.s32 %v651, 536870912
    %v653 = vshrl.u32 %v652, 30
    %v654 = vshll.u32 %v653, 30
    %v655 = vsub.s32 %v651, %v654
    %vm656 = vcmp.lt.s32.totalorder %v655, 0
    %v657 = vsub.s32 0, %v655
    %v658 = vsel %vm656, %v657, %v655
    %v659 = vclz %v658
    %v660 = vsub.s32 %v659, 2
    %vm661 = vcmp.gt.s32.totalorder 0, %v660
    %v662 = vsel %vm661, 0, %v660
    %v663 = vsub.s32 32, %v662
    %v664 = vshll.u32 %v655, %v662
    %v665 = vshrl.u32 %v647, %v663
    %v666 = vor.u32 %v664, %v665
    %v667 = vsub.s32 4294967266, %v662
    %v668 = vadd.s32 %v667, 127
    %v669 = vshll.u32 %v668, 23
    %v670 = vor.u32 4788187, %v669
    %v671 = vand.u32 2147483647, %v670
    %v673 = vcvt.s32.f32 %v666
    %v674 = vmul.f32 %v673, %v671
    %v675 = vxor.u32 %v674, 2147483648
    %v676 = vsel %vm593, %v675, %v674
    %v677 = vsub.s32 4, %v653
    %v678 = vsel %vm593, %v677, %v653
    %v679 = vsel %vm592, %v483, %v676
    %v680 = vsel %vm592, 0, %v678
    %v681 = vcosq.f32.pop %v679
    %v682 = vsinq.f32.pop %v679
    %vm683 = vweird.f32 %v483
    %v684 = vand.u32 %v680, 3
    %vm685 = vcmp.lt.s32.totalorder %v684, 2
    %vm686 = vcmp.eq.s32.totalorder %v684, 0
    %v687 = vxor.u32 %v682, 2147483648
    %v688 = vsel %vm686, %v681, %v687
    %vm689 = vcmp.eq.s32.totalorder %v684, 2
    %v690 = vxor.u32 %v681, 2147483648
    %v691 = vsel %vm689, %v690, %v682
    %v692 = vsel %vm685, %v688, %v691
    %v693 = vsel %vm683, nan, %v692
    %v694 = vsel %vm447, %v486, %v590
    %v695 = vsel %vm447, %v487, %v693
    %v696 = vadd.f32 %v450, %v694
    %v697 = vadd.f32 %v451, %v695
    loop: start=0, step=1, limit=16
    $region79: #{ehr_embeddings.1} parent=1 // loop_pre_header
      _
    $region80: #{ehr_embeddings.1} parent=1 // loop_header
      %s699 = sphi 0, %s703
      %p700 = scmp.ge.s32.totalorder %s699, 16
    $region81: #{ehr_embeddings.1} parent=1 // loop_header_branch
      %702 = sbr.rel (%p700) target = $region85
    $region82: #{ehr_embeddings.1} parent=1 // loop_body
      %s704 = smul.u32 1, 1
      %s705 = sshll.u32 %s704, 4
      %706 = dma.done [#allocation3], %s705
    $region83: #{ehr_embeddings.1} parent=1 // loop_footer
      %s703 = sadd.s32 1, %s699
    $region84: #{ehr_embeddings.1} parent=1 // loop_footer_branch
      %698 = sbr.rel target = $region80
    $region85: #{ehr_embeddings.1} parent=1 // loop_exit
      _
    %v707 = vld [vmem:[#allocation2] sm:$0xff]
    %v708 = vld [vmem:[#allocation2 + $0x8] sm:$0xff]
    %v709 = vadd.f32 %v696, %v707
    %v710 = vadd.f32 %v697, %v708
    %vm711 = vcmask 261120
    %v712 = vsel %vm711, %v709, 0.0
    %713 = vadd.xlane.f32.xlu0 %v712
    %v714 = vpop.xlane.xlu0 %713
    %v715 = vsel %vm711, %v710, 0.0
    %716 = vadd.xlane.f32.xlu0 %v715
    %v717 = vpop.xlane.xlu0 %716
    %v718 = vrcp.pop 32.0
    %v719 = vmul.f32 %v714, %v718
    %v720 = vmul.f32 %v717, %v718
    %v721 = vsub.f32 %v709, %v719
    %v722 = vsub.f32 %v710, %v720
    %v723 = vmul.f32 %v721, %v721
    %v724 = vmul.f32 %v722, %v722
    %v725 = vsel %vm711, %v723, 0.0
    %726 = vadd.xlane.f32.xlu0 %v725
    %v727 = vpop.xlane.xlu0 %726
    %v728 = vsel %vm711, %v724, 0.0
    %729 = vadd.xlane.f32.xlu0 %v728
    %v730 = vpop.xlane.xlu0 %729
    %v731 = vmul.f32 %v727, %v718
    %v732 = vmul.f32 %v730, %v718
    %v733 = vadd.f32 %v731, 1e-05
    %v734 = vadd.f32 %v732, 1e-05
    %v735 = vrsqrt.pop %v733
    %v736 = vrsqrt.pop %v734
    %v737 = vmul.f32 %v721, %v735
    %v738 = vmul.f32 %v722, %v736
    %v739 = vld [vmem:[%s10] sm:$0x1]
    %v741 = vlaneseq
    %v742 = vshrl.u32 %v741, 7
    %v743 = vsub.s32 0, %v742
    %v744 = vrot.slane %v739, %v743
    %v746 = vmul.f32 %v737, %v744
    %v747 = vmul.f32 %v738, %v744
    %v748 = vld [vmem:[%s11] sm:$0x1]
    %v750 = vlaneseq
    %v751 = vshrl.u32 %v750, 7
    %v752 = vsub.s32 0, %v751
    %v753 = vrot.slane %v748, %v752
    %v755 = vadd.f32 %v746, %v753
    %v756 = vadd.f32 %v747, %v753
    %757 = vst.msk [vmem:[#allocation6] sm:$0xff] %vm711, %v755
    %758 = vst.msk [vmem:[#allocation6 + $0x8] sm:$0xff] %vm711, %v756
    // Predicated region
    $region86: #{ehr_embeddings.1} parent=1 // pred_check
      _
    $region87: #{ehr_embeddings.1} parent=1 // pred_check_branch
      %760 = sbr.rel (0) target = $region89
    $region88: #{ehr_embeddings.1} parent=1 // pred_region
      %s762 = ssub.s32 256, 256
      %763 = vsyncadd [#allocation7], %s762
      %s764 = sshll.u32 [#allocation6], 4
      %s765 = int_to_ptr.vmem [resolvable:$true] %s764
      %770 = dma.vmem_to_hbm [thread:$0]  %s765, 256, %s12, [#allocation7], 128, 128, 8
    $region89: #{ehr_embeddings.1} parent=1 // pred_fallthru
      _
    // Predicated region
    $region90: #{ehr_embeddings.1} parent=1 // pred_check
      _
    $region91: #{ehr_embeddings.1} parent=1 // pred_check_branch
      %772 = sbr.rel (0) target = $region93
    $region92: #{ehr_embeddings.1} parent=1 // pred_region
      %773 = dma.done [#allocation7], 256
    $region93: #{ehr_embeddings.1} parent=1 // pred_fallthru
      _
    %774 = vsyncpa [#allocation7], 1
  %775 = vsyncmov [#allocation3]
  %s776 = vpop.sfrf %775
  %p777 = scmp.eq.s32.totalorder %s776, 0
  %p778 = pneg %p777
  %780 = shalt.err (%p778)

</llo_original>
